<compile_context>
chip_gen: v5e
topology: v5e:2x2
jax: 0.10.0
libtpu: 0.0.40
codegen_flags: <defaults>
</compile_context>

<pallas_src>
import functools
import math

import jax
import jax.numpy as jnp
from jax.experimental import pallas as pl
from jax.experimental.pallas import tpu as pltpu


def _sinpos_kernel(pos_ref, freq_ref, phase_ref, out_ref, *, padding_idx):
    # pos_ref  : [TB, TS, 1] f32 positions (padding tokens hold padding_idx)
    # freq_ref : [1, 1, D]   f32 = [inv_freq, inv_freq, (0)]
    # phase_ref: [1, 1, D]   f32 = [0..0, pi/2..pi/2, (0)]
    # out_ref  : [TB, TS, D] f32
    pos = pos_ref[...]
    keep = pos != jnp.float32(padding_idx)            # [TB, TS, 1]
    ang = pos * freq_ref[...] + phase_ref[...]        # [TB, TS, D] (VPU lane splat)
    # Single lane-dense full-D store; cos(x) == sin(x + pi/2); odd-D tail has
    # freq = phase = 0 so it stores exactly 0; padding rows zeroed by the where.
    out_ref[...] = jnp.where(keep, jnp.sin(ang), jnp.float32(0.0))


def _pick_tiles(bsz, seq_len, embedding_dim, target_bytes=6 * 1024 * 1024,
                seq_tile=None):
    """Pick (batch_tile, seq_tile).

    The seq tile is the sublane dim of every block, so it only needs to be a
    multiple of 8 (or the full sequence). Target multi-MiB f32 output blocks so
    the kernel sits at the HBM-store roofline. If the sequence fits in one
    block, split the batch so the grid still has >= 2 parallel steps (v7x).
    """
    if seq_tile is not None:
        ts = int(seq_tile)
    else:
        bytes_per_row = bsz * embedding_dim * 4       # output bytes per seq position
        ts = (target_bytes // max(1, bytes_per_row)) // 8 * 8
        ts = max(8, ts)
    if ts >= seq_len:
        ts = seq_len                                  # full-extent block is always legal
    seq_steps = pl.cdiv(seq_len, ts)
    if seq_steps >= 2 or bsz < 2:
        tb = bsz
    else:
        tb = pl.cdiv(bsz, 2)                          # >= 2 grid steps for 2 TCs (v7x)
    return int(tb), int(ts)


def sinusoidal_positional_embedding(tokens, embedding_dim, padding_idx, *,
                                    seq_tile=None):
    """Equivalent of SinusoidalPositionalEmbedding(embedding_dim, padding_idx)(tokens)."""
    assert embedding_dim >= 4, "embedding_dim must be >= 4 (half_dim - 1 > 0)"
    tokens = tokens.astype(jnp.int32)
    bsz, seq_len = tokens.shape
    half_dim = embedding_dim // 2

    # make_positions: cumsum along the sequence, hoisted to the wrapper.
    tok_mask = (tokens != padding_idx).astype(jnp.int32)
    positions = jnp.cumsum(tok_mask, axis=1) * tok_mask + padding_idx    # [B, S] int32
    # Feed positions as [B, S, 1] f32: S lands on sublanes (matches the output
    # layout), avoiding a lanes->sublanes relayout of the tile every grid step.
    positions_f = positions.astype(jnp.float32)[:, :, None]              # [B, S, 1]

    # inv_freq[j] = exp(-j * log(10000) / (half_dim - 1)), computed once.
    inv_freq = jnp.exp(jnp.arange(half_dim, dtype=jnp.float32) *
                       (-math.log(10000.0) / (half_dim - 1)))
    freq_full = jnp.concatenate([inv_freq, inv_freq])
    phase = jnp.concatenate([jnp.zeros((half_dim,), jnp.float32),
                             jnp.full((half_dim,), 0.5 * math.pi, jnp.float32)])
    if embedding_dim % 2 == 1:
        zero1 = jnp.zeros((1,), jnp.float32)
        freq_full = jnp.concatenate([freq_full, zero1])
        phase = jnp.concatenate([phase, zero1])
    freq_full = freq_full.reshape(1, 1, embedding_dim)
    phase = phase.reshape(1, 1, embedding_dim)

    tb, ts = _pick_tiles(bsz, seq_len, embedding_dim, seq_tile=seq_tile)
    assert ts == seq_len or ts % 8 == 0, "seq tile must be a multiple of 8 or the full sequence"
    grid = (pl.cdiv(bsz, tb), pl.cdiv(seq_len, ts))

    # VMEM: double-buffered blocks + slack; never request anywhere near the full
    # per-core VMEM (v7x only has 64 MiB per TensorCore).
    out_block_bytes = tb * ts * embedding_dim * 4
    in_block_bytes = tb * ts * 4 + 2 * embedding_dim * 4
    vmem_limit = int(min(48 << 20,
                         max(16 << 20,
                             2 * (out_block_bytes + in_block_bytes) + (2 << 20))))

    cost = pl.CostEstimate(
        flops=2 * bsz * seq_len * embedding_dim,
        transcendentals=bsz * seq_len * embedding_dim,
        bytes_accessed=bsz * seq_len * (embedding_dim + 1) * 4 + 4 * embedding_dim * 4,
    )

    kernel = functools.partial(_sinpos_kernel, padding_idx=padding_idx)

    return pl.pallas_call(
        kernel,
        out_shape=jax.ShapeDtypeStruct((bsz, seq_len, embedding_dim), jnp.float32),
        grid=grid,
        in_specs=[
            pl.BlockSpec((tb, ts, 1), lambda b, s: (b, s, 0)),              # positions
            pl.BlockSpec((1, 1, embedding_dim), lambda b, s: (0, 0, 0)),    # freq_full
            pl.BlockSpec((1, 1, embedding_dim), lambda b, s: (0, 0, 0)),    # phase
        ],
        out_specs=pl.BlockSpec((tb, ts, embedding_dim), lambda b, s: (b, s, 0)),
        compiler_params=pltpu.CompilerParams(
            dimension_semantics=("parallel", "parallel"),
            vmem_limit_bytes=vmem_limit),
        cost_estimate=cost,
    )(positions_f, freq_full, phase)


# ------------------- pure-JAX reference (mirrors the PyTorch code) -------------------
def _get_embedding_ref(num_embeddings, embedding_dim, padding_idx):
    half_dim = embedding_dim // 2
    emb = math.log(10000.0) / (half_dim - 1)
    emb = jnp.exp(jnp.arange(half_dim, dtype=jnp.float32) * -emb)
    emb = jnp.arange(num_embeddings, dtype=jnp.float32)[:, None] * emb[None, :]
    emb = jnp.concatenate([jnp.sin(emb), jnp.cos(emb)], axis=1).reshape(
        num_embeddings, -1)
    if embedding_dim % 2 == 1:
        emb = jnp.concatenate([emb, jnp.zeros((num_embeddings, 1))], axis=1)
    emb = emb.at[padding_idx, :].set(0.0)
    return emb


def _forward_ref(tokens, embedding_dim, padding_idx):
    bsz, seq_len = tokens.shape
    max_pos = padding_idx + 1 + seq_len
    weights = _get_embedding_ref(max_pos, embedding_dim, padding_idx)
    mask = (tokens != padding_idx).astype(jnp.int32)
    positions = jnp.cumsum(mask, axis=1) * mask + padding_idx
    return weights[positions.reshape(-1)].reshape(bsz, seq_len, -1)


if __name__ == "__main__":
    key = jax.random.PRNGKey(0)
    k1, k2, k3 = jax.random.split(key, 3)

    # Small, module-consistent shapes: batch=2, seq=8, embedding_dim=32.
    bsz, seq_len, embedding_dim, padding_idx = 2, 8, 32, 1
    tokens = jax.random.randint(k1, (bsz, seq_len), 0, 20, dtype=jnp.int32)
    tokens = tokens.at[0, 5].set(padding_idx).at[1, 0].set(padding_idx)
    out = jax.block_until_ready(
        sinusoidal_positional_embedding(tokens, embedding_dim, padding_idx))
    ref = _forward_ref(tokens, embedding_dim, padding_idx)
    assert out.shape == (bsz, seq_len, embedding_dim)
    assert jnp.allclose(out, ref, atol=1e-4, rtol=1e-4), "mismatch vs reference (small)"

    # Multi-block pipelined path (grid = (1, 2)), D = 128 (lane-dense output).
    bsz2, seq2, dim2 = 2, 256, 128
    tokens2 = jax.random.randint(k2, (bsz2, seq2), 0, 50, dtype=jnp.int32)
    tokens2 = tokens2.at[0, :3].set(padding_idx).at[1, 100:110].set(padding_idx)
    out2 = jax.block_until_ready(
        sinusoidal_positional_embedding(tokens2, dim2, padding_idx, seq_tile=128))
    ref2 = _forward_ref(tokens2, dim2, padding_idx)
    assert out2.shape == (bsz2, seq2, dim2)
    assert jnp.allclose(out2, ref2, atol=1e-4, rtol=1e-4), "mismatch vs reference (tiled)"

    # Odd embedding_dim path (last column must be exactly zero).
    bsz3, seq3, dim3 = 2, 16, 33
    tokens3 = jax.random.randint(k3, (bsz3, seq3), 0, 30, dtype=jnp.int32)
    tokens3 = tokens3.at[0, 2].set(padding_idx)
    out3 = jax.block_until_ready(
        sinusoidal_positional_embedding(tokens3, dim3, padding_idx))
    ref3 = _forward_ref(tokens3, dim3, padding_idx)
    assert out3.shape == (bsz3, seq3, dim3)
    assert jnp.allclose(out3, ref3, atol=1e-4, rtol=1e-4), "mismatch vs reference (odd D)"
    assert jnp.all(out3[:, :, -1] == 0.0)

    print("KERNEL_OK")
</pallas_src>

<mosaic_0001>
module attributes {stable_mosaic.version = 11 : i64} {
  func.func @_sinpos_kernel(%arg0: i32, %arg1: i32, %arg2: memref<1x8x1xf32, #tpu.memory_space<vmem>>, %arg3: memref<1x1x32xf32, #tpu.memory_space<vmem>>, %arg4: memref<1x1x32xf32, #tpu.memory_space<vmem>>, %arg5: memref<1x8x32xf32, #tpu.memory_space<vmem>>) attributes {dimension_semantics = [#tpu.dimension_semantics<parallel>, #tpu.dimension_semantics<parallel>], iteration_bounds = array<i64: 2, 1>, scalar_prefetch = 0 : i64, scratch_operands = 0 : i64, tpu.core_type = #tpu.core_type<tc>, window_params = [{transform_indices = @transform_0, window_bounds = array<i64: 1, 8, 1>}, {pipeline_mode = #tpu.pipeline_mode<synchronous>, transform_indices = @transform_1, window_bounds = array<i64: 1, 1, 32>}, {pipeline_mode = #tpu.pipeline_mode<synchronous>, transform_indices = @transform_2, window_bounds = array<i64: 1, 1, 32>}, {transform_indices = @transform_3, window_bounds = array<i64: 1, 8, 32>}]} {
    %c0 = arith.constant 0 : index
    %c0_0 = arith.constant 0 : index
    %c0_1 = arith.constant 0 : index
    %0 = vector.load %arg2[%c0, %c0_0, %c0_1] : memref<1x8x1xf32, #tpu.memory_space<vmem>>, vector<1x8x1xf32>
    %cst = arith.constant 1.000000e+00 : f32
    %1 = vector.broadcast %cst : f32 to vector<1x8x1xf32>
    %2 = arith.cmpf one, %0, %1 : vector<1x8x1xf32>
    %c0_2 = arith.constant 0 : index
    %c0_3 = arith.constant 0 : index
    %c0_4 = arith.constant 0 : index
    %3 = vector.load %arg3[%c0_2, %c0_3, %c0_4] : memref<1x1x32xf32, #tpu.memory_space<vmem>>, vector<1x1x32xf32>
    %4 = vector.broadcast %0 : vector<1x8x1xf32> to vector<1x8x32xf32>
    %5 = vector.broadcast %3 : vector<1x1x32xf32> to vector<1x8x32xf32>
    %6 = arith.mulf %4, %5 : vector<1x8x32xf32>
    %c0_5 = arith.constant 0 : index
    %c0_6 = arith.constant 0 : index
    %c0_7 = arith.constant 0 : index
    %7 = vector.load %arg4[%c0_5, %c0_6, %c0_7] : memref<1x1x32xf32, #tpu.memory_space<vmem>>, vector<1x1x32xf32>
    %8 = vector.broadcast %7 : vector<1x1x32xf32> to vector<1x8x32xf32>
    %9 = arith.addf %6, %8 : vector<1x8x32xf32>
    %10 = math.sin %9 : vector<1x8x32xf32>
    %cst_8 = arith.constant 0.000000e+00 : f32
    %11 = vector.shape_cast %2 : vector<1x8x1xi1> to vector<1x8x1xi1>
    %12 = vector.broadcast %11 : vector<1x8x1xi1> to vector<1x8x32xi1>
    %13 = vector.broadcast %cst_8 : f32 to vector<1x8x32xf32>
    %14 = arith.select %12, %10, %13 : vector<1x8x32xi1>, vector<1x8x32xf32>
    %c0_9 = arith.constant 0 : index
    %c0_10 = arith.constant 0 : index
    %c0_11 = arith.constant 0 : index
    %15 = vector.load %arg5[%c0_9, %c0_10, %c0_11] : memref<1x8x32xf32, #tpu.memory_space<vmem>>, vector<1x8x32xf32>
    tpu.vector_store %arg5[%c0_9, %c0_10, %c0_11], %14 {strides = array<i32>} : memref<1x8x32xf32, #tpu.memory_space<vmem>>, vector<1x8x32xf32>,
    return
  }
  func.func @transform_0(%arg0: i32, %arg1: i32) -> (i32, i32, i32) {
    %c0_i32 = arith.constant 0 : i32
    %c0_i32_0 = arith.constant 0 : i32
    return %arg0, %arg1, %c0_i32 : i32, i32, i32
  }
  func.func @transform_1(%arg0: i32, %arg1: i32) -> (i32, i32, i32) {
    %c0_i32 = arith.constant 0 : i32
    %c0_i32_0 = arith.constant 0 : i32
    %c0_i32_1 = arith.constant 0 : i32
    %c0_i32_2 = arith.constant 0 : i32
    return %c0_i32, %c0_i32_0, %c0_i32_1 : i32, i32, i32
  }
  func.func @transform_2(%arg0: i32, %arg1: i32) -> (i32, i32, i32) {
    %c0_i32 = arith.constant 0 : i32
    %c0_i32_0 = arith.constant 0 : i32
    %c0_i32_1 = arith.constant 0 : i32
    %c0_i32_2 = arith.constant 0 : i32
    return %c0_i32, %c0_i32_0, %c0_i32_1 : i32, i32, i32
  }
  func.func @transform_3(%arg0: i32, %arg1: i32) -> (i32, i32, i32) {
    %c0_i32 = arith.constant 0 : i32
    %c0_i32_0 = arith.constant 0 : i32
    return %arg0, %arg1, %c0_i32 : i32, i32, i32
  }
}

</mosaic_0001>

<llo_original>
// kernel: tpu_custom_call.1
$region0: #{tpu_custom_call.1}
  #allocation0 [shape = 'u32[]', space=smem, size = 0x4, offset = 0x4, fixed_abs, tag = 'smem constant byte address 0x4 - core index']
  #allocation1 [shape = 'u32[72,128]{1,0:T(1,128)}', space=vmem, size = 0x9000, scoped, tag = 'internal scratch']
  %s0 = inlined_call_operand.vmem [shape: f32[2,8,1], index: 0, kind: input, shape index: {}]
  %s1 = inlined_call_operand.vmem [shape: f32[1,1,32], index: 1, kind: input, shape index: {}]
  %s2 = inlined_call_operand.vmem [shape: f32[1,1,32], index: 2, kind: input, shape index: {}]
  %s3 = inlined_call_operand.hbm [shape: f32[2,8,32], index: 3, kind: output, shape index: {}]
  %s4 = sld [smem:[#allocation0]]
  $region45: #{tpu_custom_call.1} parent=0
    _
  %s6 = ssub.s32 1, %s4
  %s7 = scalar_select 0, %s6, %s4
  $region1: #{tpu_custom_call.1} parent=0
    #allocation2 [shape = 'u8[8192]{0}', space=vmem, size = 0x2000, scoped, tag = 'output window, operand 0']
    #allocation3 [shape = 's32[2]{0}', space=sflag, size = 0x8, scoped, tag = 'scoped memory for tpu_custom_call.1']
    %8 = vsyncpa [#allocation3], 0
    %s9 = scalar_lea.sflag [#allocation3], 1
    %10 = vsyncpa %s9, 0
    loop: start=0, step=1, limit=4
    $region2: #{tpu_custom_call.1} parent=1 // loop_pre_header
      _
    $region3: #{tpu_custom_call.1} parent=1 // loop_header
      %s12 = sphi 0, %s16
      %p13 = scmp.ge.s32.totalorder %s12, 4
      %s19 = sphi 0, %s31
      %s20 = sphi 0, %s27
      %s21 = sphi 0, %s19
      %s22 = sphi 0, %s20
      %s23 = sphi 0, %s21
      %s24 = sphi 0, %s22
      %s36 = sphi 0, %s38
      %s39 = sphi 0, %s36
      %s40 = sphi 0, %s39
      %s56 = sphi 0, %s40
      %s60 = sphi 0, %s60
      %s62 = sphi 0, %s60
      %s63 = sphi 0, %s62
      %s77 = sphi 0, %s63
      %s81 = sphi 0, %s81
      %s83 = sphi 0, %s81
      %s84 = sphi 0, %s83
      %s98 = sphi 0, %s84
      %s106 = sphi 0, %s108
      %s109 = sphi 0, %s106
      %s110 = sphi 0, %s109
      %s126 = sphi 0, %s110
    $region4: #{tpu_custom_call.1} parent=1 // loop_header_branch
      %15 = sbr.rel (%p13) target = $region8
    $region5: #{tpu_custom_call.1} parent=1 // loop_body
      %s17 = ssub.s32 %s12, 1
      %s18 = ssub.s32 %s12, 2
      %s25 = sadd.s32 1, %s20
      %p26 = scmp.ge.s32.totalorder %s25, 1
      %s27 = scalar_select %p26, 0, %s25
      %s28 = sadd.s32 1, %s19
      %s29 = scalar_select %p26, %s28, %s19
      %p30 = scmp.ge.s32.totalorder %s29, 2
      %s31 = scalar_select %p30, 0, %s29
      %s32 = ssub.s32 %s19, %s31
      %s33 = ssub.s32 %s20, %s27
      %s34 = sor.u32 %s32, %s33
      %p35 = scmp.eq.s32.totalorder %s34, 0
      %s37 = sadd.s32 %s36, 1
      %s38 = scalar_select %p35, %s36, %s37
      %p41 = pneg %p35
      %p42 = scmp.eq.s32.totalorder %s12, 1
      %p43 = por %p41, %p42
      %p44 = scmp.ne.s32.totalorder %s36, %s39
      %p45 = scmp.eq.s32.totalorder %s12, 0
      %p46 = por %p44, %p45
      %p47 = scmp.ne.s32.totalorder %s36, %s39
      %p48 = scmp.eq.s32.totalorder %s17, 1
      %p49 = por %p47, %p48
      %p50 = scmp.ne.s32.totalorder %s39, %s40
      %p51 = scmp.eq.s32.totalorder %s17, 0
      %p52 = por %p50, %p51
      %p53 = scmp.ne.s32.totalorder %s39, %s40
      %p54 = scmp.eq.s32.totalorder %s18, 1
      %p55 = por %p53, %p54
      %p57 = scmp.ne.s32.totalorder %s40, %s56
      %p58 = scmp.eq.s32.totalorder %s18, 0
      %p59 = por %p57, %p58
      %s61 = sadd.s32 %s60, 1
      %p64 = scmp.eq.s32.totalorder %s12, 1
      %p65 = scmp.ne.s32.totalorder %s60, %s62
      %p66 = scmp.eq.s32.totalorder %s12, 0
      %p67 = por %p65, %p66
      %p68 = scmp.ne.s32.totalorder %s60, %s62
      %p69 = scmp.eq.s32.totalorder %s17, 1
      %p70 = por %p68, %p69
      %p71 = scmp.ne.s32.totalorder %s62, %s63
      %p72 = scmp.eq.s32.totalorder %s17, 0
      %p73 = por %p71, %p72
      %p74 = scmp.ne.s32.totalorder %s62, %s63
      %p75 = scmp.eq.s32.totalorder %s18, 1
      %p76 = por %p74, %p75
      %p78 = scmp.ne.s32.totalorder %s63, %s77
      %p79 = scmp.eq.s32.totalorder %s18, 0
      %p80 = por %p78, %p79
      %s82 = sadd.s32 %s81, 1
      %p85 = scmp.eq.s32.totalorder %s12, 1
      %p86 = scmp.ne.s32.totalorder %s81, %s83
      %p87 = scmp.eq.s32.totalorder %s12, 0
      %p88 = por %p86, %p87
      %p89 = scmp.ne.s32.totalorder %s81, %s83
      %p90 = scmp.eq.s32.totalorder %s17, 1
      %p91 = por %p89, %p90
      %p92 = scmp.ne.s32.totalorder %s83, %s84
      %p93 = scmp.eq.s32.totalorder %s17, 0
      %p94 = por %p92, %p93
      %p95 = scmp.ne.s32.totalorder %s83, %s84
      %p96 = scmp.eq.s32.totalorder %s18, 1
      %p97 = por %p95, %p96
      %p99 = scmp.ne.s32.totalorder %s84, %s98
      %p100 = scmp.eq.s32.totalorder %s18, 0
      %p101 = por %p99, %p100
      %s102 = ssub.s32 %s19, %s31
      %s103 = ssub.s32 %s20, %s27
      %s104 = sor.u32 %s102, %s103
      %p105 = scmp.eq.s32.totalorder %s104, 0
      %s107 = sadd.s32 %s106, 1
      %s108 = scalar_select %p105, %s106, %s107
      %p111 = pneg %p105
      %p112 = scmp.eq.s32.totalorder %s12, 1
      %p113 = por %p111, %p112
      %p114 = scmp.ne.s32.totalorder %s106, %s109
      %p115 = scmp.eq.s32.totalorder %s12, 0
      %p116 = por %p114, %p115
      %p117 = scmp.ne.s32.totalorder %s106, %s109
      %p118 = scmp.eq.s32.totalorder %s17, 1
      %p119 = por %p117, %p118
      %p120 = scmp.ne.s32.totalorder %s109, %s110
      %p121 = scmp.eq.s32.totalorder %s17, 0
      %p122 = por %p120, %p121
      %p123 = scmp.ne.s32.totalorder %s109, %s110
      %p124 = scmp.eq.s32.totalorder %s18, 1
      %p125 = por %p123, %p124
      %p127 = scmp.ne.s32.totalorder %s110, %s126
      %p128 = scmp.eq.s32.totalorder %s18, 0
      %p129 = por %p127, %p128
      %p130 = scmp.le.s32.totalorder 1, %s12
      %p131 = scmp.lt.s32.totalorder %s12, 3
      %p132 = pnand %p130, %p131
      %p133 = pneg %p132
      // Predicated region
      $region9: #{tpu_custom_call.1} parent=5 // pred_check
        _
      $region10: #{tpu_custom_call.1} parent=5 // pred_check_branch
        %135 = sbr.rel (%p132) target = $region12
      $region11: #{tpu_custom_call.1} parent=5 // pred_region
        %s136 = ssub.s32 %s12, 1
        // Predicated region
        $region13: #{tpu_custom_call.1} parent=11 // pred_check
          %p137 = pneg %p73
        $region14: #{tpu_custom_call.1} parent=11 // pred_check_branch
          %139 = sbr.rel (%p137) target = $region16
        $region15: #{tpu_custom_call.1} parent=11 // pred_region
          _
        $region16: #{tpu_custom_call.1} parent=11 // pred_fallthru
          _
        // Predicated region
        $region17: #{tpu_custom_call.1} parent=11 // pred_check
          %p140 = pneg %p94
        $region18: #{tpu_custom_call.1} parent=11 // pred_check_branch
          %142 = sbr.rel (%p140) target = $region20
        $region19: #{tpu_custom_call.1} parent=11 // pred_region
          _
        $region20: #{tpu_custom_call.1} parent=11 // pred_fallthru
          _
      $region12: #{tpu_custom_call.1} parent=5 // pred_fallthru
        _
      %p143 = scmp.lt.s32.totalorder %s12, 2
      // Predicated region
      $region21: #{tpu_custom_call.1} parent=5 // pred_check
        %p144 = pneg %p143
      $region22: #{tpu_custom_call.1} parent=5 // pred_check_branch
        %146 = sbr.rel (%p144) target = $region24
      $region23: #{tpu_custom_call.1} parent=5 // pred_region
        // Predicated region
        $region25: #{tpu_custom_call.1} parent=23 // pred_check
          %p147 = pneg %p46
        $region26: #{tpu_custom_call.1} parent=23 // pred_check_branch
          %149 = sbr.rel (%p147) target = $region28
        $region27: #{tpu_custom_call.1} parent=23 // pred_region
          %p150 = scmp.lt.s32.totalorder %s19, 1
          %s151 = scalar_select %p150, %s19, 1
          %p152 = scmp.lt.s32.totalorder %s20, 0
          %s153 = scalar_select %p152, %s20, 0
          %s154 = sadd.s32 %s153, %s151
          %s155 = smul.addr %s154, 8
          %s156 = scalar_lea.vmem %s0, %s155
        $region28: #{tpu_custom_call.1} parent=23 // pred_fallthru
          _
      $region24: #{tpu_custom_call.1} parent=5 // pred_fallthru
        _
      %p157 = scmp.le.s32.totalorder 1, %s12
      %p158 = scmp.lt.s32.totalorder %s12, 3
      %p159 = pnand %p157, %p158
      %p160 = pneg %p159
      // Predicated region
      $region29: #{tpu_custom_call.1} parent=5 // pred_check
        _
      $region30: #{tpu_custom_call.1} parent=5 // pred_check_branch
        %162 = sbr.rel (%p159) target = $region32
      $region31: #{tpu_custom_call.1} parent=5 // pred_region
        %s163 = ssub.s32 %s12, 1
        %p164 = scmp.lt.s32.totalorder %s21, 1
        %s165 = scalar_select %p164, %s21, 1
        %p166 = scmp.lt.s32.totalorder %s22, 0
        %s167 = scalar_select %p166, %s22, 0
        %s168 = sadd.s32 %s167, %s165
        %s169 = smul.addr %s168, 8
        %s170 = scalar_lea.vmem %s0, %s169
        %p171 = pneg %p52
        %p172 = pneg %p49
        %p173 = pneg %p73
        %p174 = pneg %p70
        %p175 = pneg %p94
        %p176 = pneg %p91
        %p177 = pneg %p122
        %p178 = pneg %p119
        %s179 = sand.u32 %s109, 1
        %s180 = scalar_lea.sflag [#allocation3], %s179
        %s181 = sand.u32 %s109, 1
        %s182 = smul.addr %s181, 8
        %s183 = scalar_lea.vmem [#allocation2], %s182
        %p184 = scmp.lt.s32.totalorder %s21, 1
        %s185 = scalar_select %p184, %s21, 1
        %p186 = scmp.lt.s32.totalorder %s22, 0
        %s187 = scalar_select %p186, %s22, 0
        %s188 = sadd.s32 %s187, %s185
        %s189 = smul.addr %s188, 8
        %s190 = scalar_lea.vmem %s0, %s189
        %v191 = vld [vmem:[%s190] sm:$0xff]
        %vm192 = vcmp.ne.f32.partialorder %v191, 1.0
        %v193 = vld [vmem:[%s1] sm:$0x1]
        %195 = vset.pattern.permute.xlu0 0
        %196 = vperm.xlu0 %195, %v191
        %v197 = vpop.permute.xlu0 %196
        %v200 = vperm.slane %v193, 0
        %v202 = vmul.f32 %v197, %v200
        %v203 = vld [vmem:[%s2] sm:$0x1]
        %v205 = vperm.slane %v203, 0
        %v207 = vadd.f32 %v202, %v205
        %v208 = vand.u32 2147483647, %v207
        %vm209 = vcmp.le.f32.partialorder %v208, 0.7853982
        %vm210 = vcmp.lt.s32.totalorder %v207, 0
        %v211 = vand.u32 %v207, 2139095040
        %v212 = vshrl.u32 %v211, 23
        %v213 = vsub.s32 %v212, 127
        %v214 = vand.u32 2147483647, %v207
        %v215 = vand.u32 %v214, 8388607
        %v216 = vor.u32 %v215, 8388608
        %v217 = vsub.s32 0, %v216
        %v218 = vadd.s32 %v213, 1
        %vm219 = vcmp.gt.s32.totalorder %v218, 0
        %v220 = vsel %vm219, %v218, 0
        %v221 = vshrl.u32 %v220, 5
        %v222 = vand.u32 %v220, 31
        %v223 = vsub.s32 32, %v222
        %v224 = vshrl.u32 683565275, %v223
        %v225 = vshll.u32 683565275, %v222
        %v226 = vshrl.u32 2475754826, %v223
        %v227 = vor.u32 %v225, %v226
        %v228 = vshll.u32 2475754826, %v222
        %v229 = vshrl.u32 2131351028, %v223
        %v230 = vor.u32 %v228, %v229
        %v231 = vshll.u32 2131351028, %v222
        %v232 = vshrl.u32 2102212464, %v223
        %v233 = vor.u32 %v231, %v232
        %v234 = vshll.u32 2102212464, %v222
        %v235 = vshrl.u32 920167782, %v223
        %v236 = vor.u32 %v234, %v235
        %v237 = vshll.u32 920167782, %v222
        %v238 = vshrl.u32 1326507024, %v223
        %v239 = vor.u32 %v237, %v238
        %vm240 = vcmp.lt.s32.totalorder %v221, 1
        %vm241 = vcmp.lt.s32.totalorder %v221, 2
        %vm242 = vcmp.lt.s32.totalorder %v221, 3
        %vm243 = vcmp.lt.s32.totalorder %v221, 4
        %v244 = vsel %vm240, %v224, %v227
        %v245 = vsel %vm243, %v233, 2102212464
        %v246 = vsel %vm242, %v230, %v245
        %v247 = vsel %vm241, %v244, %v246
        %v248 = vsel %vm240, %v227, %v230
        %v249 = vsel %vm243, %v236, 920167782
        %v250 = vsel %vm242, %v233, %v249
        %v251 = vsel %vm241, %v248, %v250
        %v252 = vsel %vm240, %v230, %v233
        %v253 = vsel %vm243, %v239, 1326507024
        %v254 = vsel %vm242, %v236, %v253
        %v255 = vsel %vm241, %v252, %v254
        %v256 = vshll.u32 %v216, 8
        %v257 = vand.u32 %v256, 65535
        %v258 = vshrl.u32 %v256, 16
        %v259 = vand.u32 %v255, 65535
        %v260 = vshrl.u32 %v255, 16
        %v261 = vmul.u32 %v257, %v259
        %v262 = vmul.u32 %v257, %v260
        %v263 = vmul.u32 %v258, %v259
        %v264 = vmul.u32 %v258, %v260
        %v265 = vshll.u32 %v262, 16
        %v266 = vshrl.u32 %v262, 16
        %v267 = vshll.u32 %v263, 16
        %v268 = vshrl.u32 %v263, 16
        %vm269 = vc.u32 %v261, %v265
        %v270 = vsel %vm269, 1, 0
        %v271 = vadd.s32 %v261, %v265
        %v272 = vadd.s32 %v264, %v270
        %vm273 = vc.u32 %v271, %v267
        %v274 = vsel %vm273, 1, 0
        %v275 = vadd.s32 %v271, %v267
        %v276 = vadd.s32 %v272, %v274
        %v277 = vadd.s32 %v276, %v266
        %v278 = vadd.s32 %v277, %v268
        %v279 = vand.u32 %v256, 65535
        %v280 = vshrl.u32 %v256, 16
        %v281 = vand.u32 %v251, 65535
        %v282 = vshrl.u32 %v251, 16
        %v283 = vmul.u32 %v279, %v281
        %v284 = vmul.u32 %v279, %v282
        %v285 = vmul.u32 %v280, %v281
        %v286 = vmul.u32 %v280, %v282
        %v287 = vshll.u32 %v284, 16
        %v288 = vshrl.u32 %v284, 16
        %v289 = vshll.u32 %v285, 16
        %v290 = vshrl.u32 %v285, 16
        %vm291 = vc.u32 %v283, %v287
        %v292 = vsel %vm291, 1, 0
        %v293 = vadd.s32 %v283, %v287
        %v294 = vadd.s32 %v286, %v292
        %vm295 = vc.u32 %v293, %v289
        %v296 = vsel %vm295, 1, 0
        %v297 = vadd.s32 %v293, %v289
        %v298 = vadd.s32 %v294, %v296
        %v299 = vadd.s32 %v298, %v288
        %v300 = vadd.s32 %v299, %v290
        %v301 = vmul.u32 %v256, %v247
        %v302 = vadd.s32 %v278, %v297
        %vm303 = vc.u32 %v278, %v297
        %v304 = vadd.s32 %v300, 1
        %v305 = vsel %vm303, %v304, %v300
        %v306 = vadd.s32 %v301, %v305
        %v307 = vadd.s32 %v306, 536870912
        %v308 = vshrl.u32 %v307, 30
        %v309 = vshll.u32 %v308, 30
        %v310 = vsub.s32 %v306, %v309
        %vm311 = vcmp.lt.s32.totalorder %v310, 0
        %v312 = vsub.s32 0, %v310
        %v313 = vsel %vm311, %v312, %v310
        %v314 = vclz %v313
        %v315 = vsub.s32 %v314, 2
        %vm316 = vcmp.gt.s32.totalorder 0, %v315
        %v317 = vsel %vm316, 0, %v315
        %v318 = vsub.s32 32, %v317
        %v319 = vshll.u32 %v310, %v317
        %v320 = vshrl.u32 %v302, %v318
        %v321 = vor.u32 %v319, %v320
        %v322 = vsub.s32 4294967266, %v317
        %v323 = vadd.s32 %v322, 127
        %v324 = vshll.u32 %v323, 23
        %v325 = vor.u32 4788187, %v324
        %v326 = vand.u32 2147483647, %v325
        %v328 = vcvt.s32.f32 %v321
        %v329 = vmul.f32 %v328, %v326
        %v330 = vxor.u32 %v329, 2147483648
        %v331 = vsel %vm210, %v330, %v329
        %v332 = vsub.s32 4, %v308
        %v333 = vsel %vm210, %v332, %v308
        %v334 = vsel %vm209, %v207, %v331
        %v335 = vsel %vm209, 0, %v333
        %v336 = vmul.f32 %v334, %v334
        %v337 = vmul.f32 %v336, -0.001358992
        %v338 = vadd.f32 %v337, 0.041655596
        %v339 = vmul.f32 %v336, %v338
        %v340 = vadd.f32 %v339, -0.4999988
        %v341 = vmul.f32 %v336, %v340
        %v342 = vadd.f32 1.0, %v341
        %v343 = vmul.f32 %v334, %v334
        %v344 = vmul.f32 %v343, -0.00019511016
        %v345 = vadd.f32 %v344, 0.008332121
        %v346 = vmul.f32 %v343, %v345
        %v347 = vadd.f32 %v346, -0.16666654
        %v348 = vmul.f32 %v343, %v347
        %v349 = vadd.f32 %v348, 1.0
        %v350 = vmul.f32 %v349, %v334
        %vm351 = vweird.f32 %v207
        %v352 = vadd.s32 %v335, 3
        %v353 = vand.u32 %v352, 3
        %vm354 = vcmp.lt.s32.totalorder %v353, 2
        %vm355 = vcmp.eq.s32.totalorder %v353, 0
        %v356 = vxor.u32 %v350, 2147483648
        %v357 = vsel %vm355, %v342, %v356
        %vm358 = vcmp.eq.s32.totalorder %v353, 2
        %v359 = vxor.u32 %v342, 2147483648
        %v360 = vsel %vm358, %v359, %v350
        %v361 = vsel %vm354, %v357, %v360
        %v362 = vsel %vm351, nan, %v361
        %v363 = vsel %vm192, 1, 0
        %364 = vset.pattern.permute.xlu0 0
        %365 = vperm.xlu0 %364, %v363
        %v366 = vpop.permute.xlu0 %365
        %vm367 = vcmp.eq.s32.totalorder %v366, 1
        %v368 = vsel %vm367, %v362, 0.0
        %vm369 = vcmask 261120
        %370 = vst.msk [vmem:[%s183] sm:$0xff] %vm369, %v368
        %s371 = sand.u32 %s109, 1
        %s372 = scalar_lea.sflag [#allocation3], %s371
        %s373 = sand.u32 %s109, 1
        %s374 = smul.addr %s373, 8
        %s375 = scalar_lea.vmem [#allocation2], %s374
        // Predicated region
        $region33: #{tpu_custom_call.1} parent=31 // pred_check
          %p376 = pneg %p119
        $region34: #{tpu_custom_call.1} parent=31 // pred_check_branch
          %378 = sbr.rel (%p376) target = $region36
        $region35: #{tpu_custom_call.1} parent=31 // pred_region
          %380 = vsyncadd %s372, 0
          %s381 = sadd.s32 %s22, %s21
          %s382 = smul.addr %s381, 8
          %s383 = scalar_lea.hbm %s3, %s382
          %s385 = sshll.u32 %s375, 4
          %s386 = int_to_ptr.vmem [resolvable:$true] %s385
          %s387 = sshll.u32 %s383, 4
          %s388 = int_to_ptr.hbm [resolvable:$true] %s387
          %390 = dma.vmem_to_hbm [thread:$0]  %s386, 128, %s388, %s372
        $region36: #{tpu_custom_call.1} parent=31 // pred_fallthru
          _
      $region32: #{tpu_custom_call.1} parent=5 // pred_fallthru
        _
      %p391 = scmp.le.s32.totalorder 2, %s12
      // Predicated region
      $region37: #{tpu_custom_call.1} parent=5 // pred_check
        %p392 = pneg %p391
      $region38: #{tpu_custom_call.1} parent=5 // pred_check_branch
        %394 = sbr.rel (%p392) target = $region40
      $region39: #{tpu_custom_call.1} parent=5 // pred_region
        %s395 = ssub.s32 %s12, 2
        // Predicated region
        $region41: #{tpu_custom_call.1} parent=39 // pred_check
          %p396 = pneg %p125
        $region42: #{tpu_custom_call.1} parent=39 // pred_check_branch
          %398 = sbr.rel (%p396) target = $region44
        $region43: #{tpu_custom_call.1} parent=39 // pred_region
          %s399 = sand.u32 %s110, 1
          %s400 = scalar_lea.sflag [#allocation3], %s399
          %s401 = sand.u32 %s110, 1
          %s402 = smul.addr %s401, 8
          %s403 = scalar_lea.vmem [#allocation2], %s402
          %405 = dma.done %s400, 128
        $region44: #{tpu_custom_call.1} parent=39 // pred_fallthru
          _
      $region40: #{tpu_custom_call.1} parent=5 // pred_fallthru
        _
    $region6: #{tpu_custom_call.1} parent=1 // loop_footer
      %s16 = sadd.s32 1, %s12
    $region7: #{tpu_custom_call.1} parent=1 // loop_footer_branch
      %11 = sbr.rel target = $region3
    $region8: #{tpu_custom_call.1} parent=1 // loop_exit
      _
    %406 = vsyncpa [#allocation3], 1
    %s407 = scalar_lea.sflag [#allocation3], 1
    %408 = vsyncpa %s407, 1

</llo_original>
